<compile_context>
chip_gen: v5e
topology: v5e:2x2
jax: 0.10.0
libtpu: 0.0.40
codegen_flags: <defaults>
</compile_context>

<pallas_src>
import functools

import jax
import jax.numpy as jnp
from jax.experimental import pallas as pl
from jax.experimental.pallas import tpu as pltpu

LANE = 128


# --------------------------------------------------------------------------
# Kernel
# --------------------------------------------------------------------------
def _attention_kernel(x_ref, wqkv_ref, wout_ref, bout_ref, o_ref, *,
                      scale, causal, block_b, seq_len, di_pad, compute_dtype):
    # x arrives in its original dtype (f32); cast to the MXU operand dtype in
    # VMEM (avoids a wrapper-side HBM cast round trip).
    x = x_ref[...].astype(compute_dtype)                                  # (R, D_in)

    # Fused QKV projection: one wide MXU pass, f32 accumulation.  The weight
    # is laid out as [Wq | Wk | Wv] with each block lane-padded to di_pad, so
    # the q/k/v splits below start on 128-lane boundaries.
    qkv = jnp.dot(x, wqkv_ref[...], preferred_element_type=jnp.float32)   # (R, 3*di_pad)
    qkv = qkv.reshape(block_b, seq_len, 3 * di_pad)                       # (Bt, N, 3*di_pad)
    q = qkv[:, :, 0 * di_pad:1 * di_pad].astype(compute_dtype)
    k = qkv[:, :, 1 * di_pad:2 * di_pad].astype(compute_dtype)
    v = qkv[:, :, 2 * di_pad:3 * di_pad].astype(compute_dtype)

    # sim[b,i,j] = q[b,i,:] . k[b,j,:] — contract last dims, no XLU transpose.
    # (zero-padded feature columns contribute nothing.)
    sim = jax.lax.dot_general(
        q, k, dimension_numbers=(((2,), (2,)), ((0,), (0,))),
        preferred_element_type=jnp.float32) * scale                       # (Bt, N, N)

    if causal:
        # Single (N, N) mask broadcast over the batch block.
        row = jax.lax.broadcasted_iota(jnp.int32, (seq_len, seq_len), 0)
        col = jax.lax.broadcasted_iota(jnp.int32, (seq_len, seq_len), 1)
        sim = jnp.where((col > row)[None, :, :],
                        -jnp.finfo(jnp.float32).max, sim)

    # Softmax over the key axis in f32 (exact divide; matches the reference).
    sim_max = jnp.max(sim, axis=-1, keepdims=True)
    e = jnp.exp(sim - sim_max)
    attn = e / jnp.sum(e, axis=-1, keepdims=True)

    # out[b,i,d] = sum_j attn[b,i,j] * v[b,j,d]
    out = jax.lax.dot_general(
        attn.astype(compute_dtype), v,
        dimension_numbers=(((2,), (1,)), ((0,), (0,))),
        preferred_element_type=jnp.float32)                               # (Bt, N, di_pad)

    # Output projection on the flattened slab (one fat MXU pass); bias added
    # post-accumulation in f32.
    out2d = out.astype(compute_dtype).reshape(block_b * seq_len, di_pad)
    proj = jnp.dot(out2d, wout_ref[...], preferred_element_type=jnp.float32)
    proj = proj + bout_ref[...]
    o_ref[...] = proj.astype(o_ref.dtype)


# --------------------------------------------------------------------------
# One-time parameter preparation (keep out of the per-call path)
# --------------------------------------------------------------------------
def prepare_attention_params(w_qkv, w_out, b_out, *, dim_inner,
                             compute_dtype=jnp.float32, pad_output_lanes=False):
    """w_qkv: (D_in, 3*dim_inner); w_out: (dim_inner, D_out); b_out: (1, D_out)."""
    D_in = w_qkv.shape[0]
    D_out = w_out.shape[1]
    di = dim_inner

    # Lane-align the q/k/v split (no-op when dim_inner % 128 == 0).
    di_pad = di if di % LANE == 0 else ((di + LANE - 1) // LANE) * LANE
    if di_pad != di:
        wq, wk, wv = (w_qkv[:, i * di:(i + 1) * di] for i in range(3))
        colpad = ((0, 0), (0, di_pad - di))
        w_qkv_p = jnp.concatenate(
            [jnp.pad(wq, colpad), jnp.pad(wk, colpad), jnp.pad(wv, colpad)], axis=1)
        w_out_p = jnp.pad(w_out, ((0, di_pad - di), (0, 0)))
    else:
        w_qkv_p, w_out_p = w_qkv, w_out

    # Optional lane-dense output padding (off by default: only pays when the
    # store path is the bottleneck, and is a no-op for D_out % 128 == 0).
    b_out_p = b_out
    D_out_blk, out_pad = D_out, 0
    if pad_output_lanes and D_out % LANE != 0:
        D_out_blk = ((D_out + LANE - 1) // LANE) * LANE
        out_pad = D_out_blk - D_out
        w_out_p = jnp.pad(w_out_p, ((0, 0), (0, out_pad)))
        b_out_p = jnp.pad(b_out, ((0, 0), (0, out_pad)))

    return dict(
        w_qkv=w_qkv_p.astype(compute_dtype),
        w_out=w_out_p.astype(compute_dtype),
        b_out=b_out_p.astype(jnp.float32),
        dim_inner=di, di_pad=di_pad, D_in=D_in, D_out=D_out,
        D_out_blk=D_out_blk, out_pad=out_pad, compute_dtype=compute_dtype)


# --------------------------------------------------------------------------
# Block-size / VMEM heuristics
# --------------------------------------------------------------------------
def _num_tensorcores():
    # v5e/v6e expose one TensorCore per chip, v7x two.  Fall back to 1
    # (single-TC sizing) if the backend does not report it.
    try:
        return max(1, int(getattr(jax.devices()[0], "num_cores", 1)))
    except Exception:
        return 1


def _estimate_vmem_bytes(block_b, N, D_in, di_pad, D_out_blk,
                         in_bytes, c_bytes, out_bytes):
    R = block_b * N
    x_blk = R * D_in * in_bytes * 2                       # double-buffered input block
    o_blk = R * D_out_blk * out_bytes * 2                 # double-buffered output block
    wgt = (D_in * 3 * di_pad + di_pad * D_out_blk) * c_bytes + D_out_blk * 4  # Buffered(1)
    tmp = R * (3 * di_pad * 4 + 3 * di_pad * c_bytes + di_pad * 4 + D_out_blk * 4)
    tmp += 3 * block_b * N * N * 4                        # sim / e / attn
    return x_blk + o_blk + wgt + tmp


def _pick_block_b(B, N, D_in, di_pad, D_out_blk, in_bytes, c_bytes, out_bytes,
                  num_cores, vmem_budget_bytes):
    divisors = [d for d in range(1, B + 1) if B % d == 0]
    fitting = [d for d in divisors
               if _estimate_vmem_bytes(d, N, D_in, di_pad, D_out_blk,
                                       in_bytes, c_bytes, out_bytes)
               <= vmem_budget_bytes] or [1]
    block_b = fitting[-1]                                 # largest block that fits VMEM
    if num_cores > 1:
        # Keep the (serial-per-core) grid length a multiple of the core count
        # so megacore sharding stays balanced.
        pref = [d for d in fitting if (B // d) % num_cores == 0]
        if pref:
            block_b = pref[-1]
    return block_b


# --------------------------------------------------------------------------
# Wrapper
# --------------------------------------------------------------------------
def attention_pallas(x, params, *, causal=False, block_b=None,
                     vmem_budget_bytes=24 << 20):
    """x: (B, N, D_in); params from prepare_attention_params.  Returns (B, N, D_out)."""
    B, N, D_in = x.shape
    assert D_in == params["D_in"]
    di_pad = params["di_pad"]
    D_out, D_out_blk = params["D_out"], params["D_out_blk"]
    cdt = params["compute_dtype"]
    scale = float(params["dim_inner"]) ** -0.5
    out_dtype = x.dtype

    in_bytes = jnp.dtype(x.dtype).itemsize
    c_bytes = jnp.dtype(cdt).itemsize
    out_bytes = jnp.dtype(out_dtype).itemsize

    if block_b is None:
        block_b = _pick_block_b(B, N, D_in, di_pad, D_out_blk, in_bytes, c_bytes,
                                out_bytes, _num_tensorcores(), vmem_budget_bytes)
    assert B % block_b == 0
    R = block_b * N
    grid_b = B // block_b

    # Raise scoped VMEM only when the estimate exceeds the smallest default
    # (16 MiB on v5e); cap at 64 MiB (v7x physical) to leave headroom.
    est = _estimate_vmem_bytes(block_b, N, D_in, di_pad, D_out_blk,
                               in_bytes, c_bytes, out_bytes)
    extra_cp = {}
    if est > (12 << 20):
        extra_cp["vmem_limit_bytes"] = min(int(est * 1.5) + (4 << 20), 64 << 20)

    kernel = functools.partial(
        _attention_kernel, scale=scale, causal=causal, block_b=block_b,
        seq_len=N, di_pad=di_pad, compute_dtype=cdt)

    # NOTE: the in-kernel (R, 3*di_pad) <-> (Bt, N, 3*di_pad) reshapes are only
    # free when N is a multiple of the sublane tile (8 for f32, 16 for bf16).
    x2d = x.reshape(B * N, D_in)                          # free reshape; rows are batch-major

    def _call(weight_pipeline_kwargs):
        return pl.pallas_call(
            kernel,
            out_shape=jax.ShapeDtypeStruct((B * N, D_out_blk), out_dtype),
            grid_spec=pltpu.PrefetchScalarGridSpec(
                num_scalar_prefetch=0,
                grid=(grid_b,),
                in_specs=[
                    pl.BlockSpec((R, D_in), lambda g: (g, 0)),
                    pl.BlockSpec((D_in, 3 * di_pad), lambda g: (0, 0),
                                 **weight_pipeline_kwargs),
                    pl.BlockSpec((di_pad, D_out_blk), lambda g: (0, 0),
                                 **weight_pipeline_kwargs),
                    pl.BlockSpec((1, D_out_blk), lambda g: (0, 0),
                                 **weight_pipeline_kwargs),
                ],
                out_specs=pl.BlockSpec((R, D_out_blk), lambda g: (g, 0)),
            ),
            compiler_params=pltpu.CompilerParams(
                dimension_semantics=("parallel",), **extra_cp),
        )(x2d, params["w_qkv"], params["w_out"], params["b_out"])

    try:
        # Constant-index operands: single buffer (halves weight VMEM).
        out2d = _call({"pipeline_mode": pl.Buffered(1)})
    except Exception:
        # Fallback: default double buffering (correctness over the VMEM saving).
        out2d = _call({})

    if params["out_pad"]:
        out2d = out2d[:, :D_out]
    return out2d.reshape(B, N, D_out)


# --------------------------------------------------------------------------
# Pure-JAX reference (mirrors the PyTorch forward exactly, f32)
# --------------------------------------------------------------------------
def attention_ref(x, w_qkv, w_out, b_out, *, dim_inner, causal=False):
    scale = float(dim_inner) ** -0.5
    qkv = jnp.einsum('bnd,de->bne', x, w_qkv)
    q, k, v = jnp.split(qkv, 3, axis=-1)
    sim = jnp.einsum('bid,bjd->bij', q, k) * scale
    if causal:
        n = sim.shape[-1]
        mask = jnp.triu(jnp.ones((n, n), dtype=bool), 1)
        sim = jnp.where(mask[None], -jnp.finfo(q.dtype).max, sim)
    attn = jax.nn.softmax(sim, axis=-1)
    out = jnp.einsum('bij,bjd->bid', attn, v)
    return jnp.einsum('bid,de->bie', out, w_out) + b_out[None]


# --------------------------------------------------------------------------
# Self-test
# --------------------------------------------------------------------------
if __name__ == "__main__":
    key = jax.random.PRNGKey(0)
    kx, kqkv, kwo, kbo, kx2 = jax.random.split(key, 5)

    dim_in, dim_inner, dim_out = 32, 16, 32
    N = 16

    w_qkv = jax.random.normal(kqkv, (dim_in, dim_inner * 3), jnp.float32) * 0.1
    w_out = jax.random.normal(kwo, (dim_inner, dim_out), jnp.float32) * 0.1
    b_out = jax.random.normal(kbo, (1, dim_out), jnp.float32) * 0.1

    params_f32 = prepare_attention_params(w_qkv, w_out, b_out, dim_inner=dim_inner)
    params_bf16 = prepare_attention_params(w_qkv, w_out, b_out, dim_inner=dim_inner,
                                           compute_dtype=jnp.bfloat16)

    # Config 1: B=2, f32, non-causal (block_b auto-picked from VMEM budget).
    x = jax.random.normal(kx, (2, N, dim_in), jnp.float32)
    y = jax.block_until_ready(attention_pallas(x, params_f32, causal=False))
    y_ref = attention_ref(x, w_qkv, w_out, b_out, dim_inner=dim_inner, causal=False)
    assert y.shape == (2, N, dim_out)
    assert jnp.allclose(y, y_ref, atol=1e-4, rtol=1e-4), "mismatch (f32, non-causal)"

    # Config 2: B=2, f32, causal.
    y_c = jax.block_until_ready(attention_pallas(x, params_f32, causal=True))
    y_c_ref = attention_ref(x, w_qkv, w_out, b_out, dim_inner=dim_inner, causal=True)
    assert jnp.allclose(y_c, y_c_ref, atol=1e-4, rtol=1e-4), "mismatch (f32, causal)"

    # Config 3: B=8, bf16 MXU operands (f32 accumulation), explicit block_b=4.
    x8 = jax.random.normal(kx2, (8, N, dim_in), jnp.float32)
    y8 = jax.block_until_ready(
        attention_pallas(x8, params_bf16, causal=False, block_b=4))
    y8_ref = attention_ref(x8, w_qkv, w_out, b_out, dim_inner=dim_inner, causal=False)
    assert jnp.allclose(y8, y8_ref, atol=5e-2, rtol=5e-2), "mismatch (bf16, batched)"

    print("KERNEL_OK")
</pallas_src>

<mosaic_0001>
module attributes {stable_mosaic.version = 11 : i64} {
  func.func @_attention_kernel(%arg0: i32, %arg1: memref<32x32xf32, #tpu.memory_space<vmem>>, %arg2: memref<32x384xf32, #tpu.memory_space<vmem>>, %arg3: memref<128x32xf32, #tpu.memory_space<vmem>>, %arg4: memref<1x32xf32, #tpu.memory_space<vmem>>, %arg5: memref<32x32xf32, #tpu.memory_space<vmem>>) attributes {dimension_semantics = [#tpu.dimension_semantics<parallel>], iteration_bounds = array<i64: 1>, scalar_prefetch = 0 : i64, scratch_operands = 0 : i64, tpu.core_type = #tpu.core_type<tc>, window_params = [{transform_indices = @transform_0, window_bounds = array<i64: 32, 32>}, {pipeline_mode = #tpu.pipeline_mode<synchronous>, transform_indices = @transform_1, window_bounds = array<i64: 32, 384>}, {pipeline_mode = #tpu.pipeline_mode<synchronous>, transform_indices = @transform_2, window_bounds = array<i64: 128, 32>}, {pipeline_mode = #tpu.pipeline_mode<synchronous>, transform_indices = @transform_3, window_bounds = array<i64: 1, 32>}, {transform_indices = @transform_4, window_bounds = array<i64: 32, 32>}]} {
    %c0 = arith.constant 0 : index
    %c0_0 = arith.constant 0 : index
    %0 = vector.load %arg1[%c0, %c0_0] : memref<32x32xf32, #tpu.memory_space<vmem>>, vector<32x32xf32>
    %c0_1 = arith.constant 0 : index
    %c0_2 = arith.constant 0 : index
    %1 = vector.load %arg2[%c0_1, %c0_2] : memref<32x384xf32, #tpu.memory_space<vmem>>, vector<32x384xf32>
    %cst = arith.constant dense<0.000000e+00> : vector<32x384xf32>
    %2 = tpu.matmul %0, %1, %cst {dimension_numbers = #tpu.dot_dimension_numbers<[1], [0], [0], [1], [0, 0, 1, 1], [], []>} : vector<32x32xf32>, vector<32x384xf32>, vector<32x384xf32> -> vector<32x384xf32>
    %3 = vector.shape_cast %2 : vector<32x384xf32> to vector<2x16x384xf32>
    %4 = vector.extract_strided_slice %3 {offsets = [0, 0, 0], sizes = [2, 16, 128], strides = [1, 1, 1]} : vector<2x16x384xf32> to vector<2x16x128xf32>
    %5 = vector.extract_strided_slice %3 {offsets = [0, 0, 128], sizes = [2, 16, 128], strides = [1, 1, 1]} : vector<2x16x384xf32> to vector<2x16x128xf32>
    %6 = vector.extract_strided_slice %3 {offsets = [0, 0, 256], sizes = [2, 16, 128], strides = [1, 1, 1]} : vector<2x16x384xf32> to vector<2x16x128xf32>
    %cst_3 = arith.constant dense<0.000000e+00> : vector<2x16x16xf32>
    %7 = tpu.matmul %4, %5, %cst_3 {dimension_numbers = #tpu.dot_dimension_numbers<[2], [2], [1], [1], [0, 0, 0, 1, 1, 1], [0], [0]>} : vector<2x16x128xf32>, vector<2x16x128xf32>, vector<2x16x16xf32> -> vector<2x16x16xf32>
    %cst_4 = arith.constant 2.500000e-01 : f32
    %8 = vector.broadcast %cst_4 : f32 to vector<2x16x16xf32>
    %9 = arith.mulf %7, %8 : vector<2x16x16xf32>
    %cst_5 = arith.constant dense<0xFF800000> : vector<2x16xf32>
    %10 = vector.multi_reduction <maximumf>, %9, %cst_5 [2] : vector<2x16x16xf32> to vector<2x16xf32>
    %11 = vector.shape_cast %10 : vector<2x16xf32> to vector<2x16x1xf32>
    %12 = vector.broadcast %11 : vector<2x16x1xf32> to vector<2x16x16xf32>
    %13 = arith.subf %9, %12 : vector<2x16x16xf32>
    %14 = math.exp %13 : vector<2x16x16xf32>
    %cst_6 = arith.constant dense<0.000000e+00> : vector<2x16xf32>
    %15 = vector.multi_reduction <add>, %14, %cst_6 [2] : vector<2x16x16xf32> to vector<2x16xf32>
    %16 = vector.shape_cast %15 : vector<2x16xf32> to vector<2x16x1xf32>
    %17 = vector.broadcast %16 : vector<2x16x1xf32> to vector<2x16x16xf32>
    %18 = arith.divf %14, %17 : vector<2x16x16xf32>
    %cst_7 = arith.constant dense<0.000000e+00> : vector<2x16x128xf32>
    %19 = tpu.matmul %18, %6, %cst_7 {dimension_numbers = #tpu.dot_dimension_numbers<[2], [1], [1], [2], [0, 0, 0, 1, 1, 2], [0], [0]>} : vector<2x16x16xf32>, vector<2x16x128xf32>, vector<2x16x128xf32> -> vector<2x16x128xf32>
    %20 = vector.shape_cast %19 : vector<2x16x128xf32> to vector<32x128xf32>
    %c0_8 = arith.constant 0 : index
    %c0_9 = arith.constant 0 : index
    %21 = vector.load %arg3[%c0_8, %c0_9] : memref<128x32xf32, #tpu.memory_space<vmem>>, vector<128x32xf32>
    %cst_10 = arith.constant dense<0.000000e+00> : vector<32x32xf32>
    %22 = tpu.matmul %20, %21, %cst_10 {dimension_numbers = #tpu.dot_dimension_numbers<[1], [0], [0], [1], [0, 0, 1, 1], [], []>} : vector<32x128xf32>, vector<128x32xf32>, vector<32x32xf32> -> vector<32x32xf32>
    %c0_11 = arith.constant 0 : index
    %c0_12 = arith.constant 0 : index
    %23 = vector.load %arg4[%c0_11, %c0_12] : memref<1x32xf32, #tpu.memory_space<vmem>>, vector<1x32xf32>
    %24 = vector.broadcast %23 : vector<1x32xf32> to vector<32x32xf32>
    %25 = arith.addf %22, %24 : vector<32x32xf32>
    %c0_13 = arith.constant 0 : index
    %c0_14 = arith.constant 0 : index
    %26 = vector.load %arg5[%c0_13, %c0_14] : memref<32x32xf32, #tpu.memory_space<vmem>>, vector<32x32xf32>
    tpu.vector_store %arg5[%c0_13, %c0_14], %25 {strides = array<i32>} : memref<32x32xf32, #tpu.memory_space<vmem>>, vector<32x32xf32>,
    return
  }
  func.func @transform_0(%arg0: i32) -> (i32, i32) {
    %c0_i32 = arith.constant 0 : i32
    %c0_i32_0 = arith.constant 0 : i32
    return %arg0, %c0_i32 : i32, i32
  }
  func.func @transform_1(%arg0: i32) -> (i32, i32) {
    %c0_i32 = arith.constant 0 : i32
    %c0_i32_0 = arith.constant 0 : i32
    %c0_i32_1 = arith.constant 0 : i32
    return %c0_i32, %c0_i32_0 : i32, i32
  }
  func.func @transform_2(%arg0: i32) -> (i32, i32) {
    %c0_i32 = arith.constant 0 : i32
    %c0_i32_0 = arith.constant 0 : i32
    %c0_i32_1 = arith.constant 0 : i32
    return %c0_i32, %c0_i32_0 : i32, i32
  }
  func.func @transform_3(%arg0: i32) -> (i32, i32) {
    %c0_i32 = arith.constant 0 : i32
    %c0_i32_0 = arith.constant 0 : i32
    %c0_i32_1 = arith.constant 0 : i32
    return %c0_i32, %c0_i32_0 : i32, i32
  }
  func.func @transform_4(%arg0: i32) -> (i32, i32) {
    %c0_i32 = arith.constant 0 : i32
    %c0_i32_0 = arith.constant 0 : i32
    return %arg0, %c0_i32 : i32, i32
  }
}

module attributes {stable_mosaic.version = 11 : i64} {
  func.func @_attention_kernel(%arg0: i32, %arg1: memref<32x32xf32, #tpu.memory_space<vmem>>, %arg2: memref<32x384xf32, #tpu.memory_space<vmem>>, %arg3: memref<128x32xf32, #tpu.memory_space<vmem>>, %arg4: memref<1x32xf32, #tpu.memory_space<vmem>>, %arg5: memref<32x32xf32, #tpu.memory_space<vmem>>) attributes {dimension_semantics = [#tpu.dimension_semantics<parallel>], iteration_bounds = array<i64: 1>, scalar_prefetch = 0 : i64, scratch_operands = 0 : i64, tpu.core_type = #tpu.core_type<tc>, window_params = [{transform_indices = @transform_0, window_bounds = array<i64: 32, 32>}, {pipeline_mode = #tpu.pipeline_mode<synchronous>, transform_indices = @transform_1, window_bounds = array<i64: 32, 384>}, {pipeline_mode = #tpu.pipeline_mode<synchronous>, transform_indices = @transform_2, window_bounds = array<i64: 128, 32>}, {pipeline_mode = #tpu.pipeline_mode<synchronous>, transform_indices = @transform_3, window_bounds = array<i64: 1, 32>}, {transform_indices = @transform_4, window_bounds = array<i64: 32, 32>}]} {
    %c0 = arith.constant 0 : index
    %c0_0 = arith.constant 0 : index
    %0 = vector.load %arg1[%c0, %c0_0] : memref<32x32xf32, #tpu.memory_space<vmem>>, vector<32x32xf32>
    %c0_1 = arith.constant 0 : index
    %c0_2 = arith.constant 0 : index
    %1 = vector.load %arg2[%c0_1, %c0_2] : memref<32x384xf32, #tpu.memory_space<vmem>>, vector<32x384xf32>
    %cst = arith.constant dense<0.000000e+00> : vector<32x384xf32>
    %2 = tpu.matmul %0, %1, %cst {dimension_numbers = #tpu.dot_dimension_numbers<[1], [0], [0], [1], [0, 0, 1, 1], [], []>} : vector<32x32xf32>, vector<32x384xf32>, vector<32x384xf32> -> vector<32x384xf32>
    %3 = vector.shape_cast %2 : vector<32x384xf32> to vector<2x16x384xf32>
    %4 = vector.extract_strided_slice %3 {offsets = [0, 0, 0], sizes = [2, 16, 128], strides = [1, 1, 1]} : vector<2x16x384xf32> to vector<2x16x128xf32>
    %5 = vector.extract_strided_slice %3 {offsets = [0, 0, 128], sizes = [2, 16, 128], strides = [1, 1, 1]} : vector<2x16x384xf32> to vector<2x16x128xf32>
    %6 = vector.extract_strided_slice %3 {offsets = [0, 0, 256], sizes = [2, 16, 128], strides = [1, 1, 1]} : vector<2x16x384xf32> to vector<2x16x128xf32>
    %cst_3 = arith.constant dense<0.000000e+00> : vector<2x16x16xf32>
    %7 = tpu.matmul %4, %5, %cst_3 {dimension_numbers = #tpu.dot_dimension_numbers<[2], [2], [1], [1], [0, 0, 0, 1, 1, 1], [0], [0]>} : vector<2x16x128xf32>, vector<2x16x128xf32>, vector<2x16x16xf32> -> vector<2x16x16xf32>
    %cst_4 = arith.constant 2.500000e-01 : f32
    %8 = vector.broadcast %cst_4 : f32 to vector<2x16x16xf32>
    %9 = arith.mulf %7, %8 : vector<2x16x16xf32>
    %cst_5 = arith.constant dense<0xFF800000> : vector<2x16xf32>
    %10 = vector.multi_reduction <maximumf>, %9, %cst_5 [2] : vector<2x16x16xf32> to vector<2x16xf32>
    %11 = vector.shape_cast %10 : vector<2x16xf32> to vector<2x16x1xf32>
    %12 = vector.broadcast %11 : vector<2x16x1xf32> to vector<2x16x16xf32>
    %13 = arith.subf %9, %12 : vector<2x16x16xf32>
    %14 = math.exp %13 : vector<2x16x16xf32>
    %cst_6 = arith.constant dense<0.000000e+00> : vector<2x16xf32>
    %15 = vector.multi_reduction <add>, %14, %cst_6 [2] : vector<2x16x16xf32> to vector<2x16xf32>
    %16 = vector.shape_cast %15 : vector<2x16xf32> to vector<2x16x1xf32>
    %17 = vector.broadcast %16 : vector<2x16x1xf32> to vector<2x16x16xf32>
    %18 = arith.divf %14, %17 : vector<2x16x16xf32>
    %cst_7 = arith.constant dense<0.000000e+00> : vector<2x16x128xf32>
    %19 = tpu.matmul %18, %6, %cst_7 {dimension_numbers = #tpu.dot_dimension_numbers<[2], [1], [1], [2], [0, 0, 0, 1, 1, 2], [0], [0]>} : vector<2x16x16xf32>, vector<2x16x128xf32>, vector<2x16x128xf32> -> vector<2x16x128xf32>
    %20 = vector.shape_cast %19 : vector<2x16x128xf32> to vector<32x128xf32>
    %c0_8 = arith.constant 0 : index
    %c0_9 = arith.constant 0 : index
    %21 = vector.load %arg3[%c0_8, %c0_9] : memref<128x32xf32, #tpu.memory_space<vmem>>, vector<128x32xf32>
    %cst_10 = arith.constant dense<0.000000e+00> : vector<32x32xf32>
    %22 = tpu.matmul %20, %21, %cst_10 {dimension_numbers = #tpu.dot_dimension_numbers<[1], [0], [0], [1], [0, 0, 1, 1], [], []>} : vector<32x128xf32>, vector<128x32xf32>, vector<32x32xf32> -> vector<32x32xf32>
    %c0_11 = arith.constant 0 : index
    %c0_12 = arith.constant 0 : index
    %23 = vector.load %arg4[%c0_11, %c0_12] : memref<1x32xf32, #tpu.memory_space<vmem>>, vector<1x32xf32>
    %24 = vector.broadcast %23 : vector<1x32xf32> to vector<32x32xf32>
    %25 = arith.addf %22, %24 : vector<32x32xf32>
    %c0_13 = arith.constant 0 : index
    %c0_14 = arith.constant 0 : index
    %26 = vector.load %arg5[%c0_13, %c0_14] : memref<32x32xf32, #tpu.memory_space<vmem>>, vector<32x32xf32>
    tpu.vector_store %arg5[%c0_13, %c0_14], %25 {strides = array<i32>} : memref<32x32xf32, #tpu.memory_space<vmem>>, vector<32x32xf32>,
    return
  }
  func.func @transform_0(%arg0: i32) -> (i32, i32) {
    %c0_i32 = arith.constant 0 : i32
    %c0_i32_0 = arith.constant 0 : i32
    return %arg0, %c0_i32 : i32, i32
  }
  func.func @transform_1(%arg0: i32) -> (i32, i32) {
    %c0_i32 = arith.constant 0 : i32
    %c0_i32_0 = arith.constant 0 : i32
    %c0_i32_1 = arith.constant 0 : i32
    return %c0_i32, %c0_i32_0 : i32, i32
  }
  func.func @transform_2(%arg0: i32) -> (i32, i32) {
    %c0_i32 = arith.constant 0 : i32
    %c0_i32_0 = arith.constant 0 : i32
    %c0_i32_1 = arith.constant 0 : i32
    return %c0_i32, %c0_i32_0 : i32, i32
  }
  func.func @transform_3(%arg0: i32) -> (i32, i32) {
    %c0_i32 = arith.constant 0 : i32
    %c0_i32_0 = arith.constant 0 : i32
    %c0_i32_1 = arith.constant 0 : i32
    return %c0_i32, %c0_i32_0 : i32, i32
  }
  func.func @transform_4(%arg0: i32) -> (i32, i32) {
    %c0_i32 = arith.constant 0 : i32
    %c0_i32_0 = arith.constant 0 : i32
    return %arg0, %c0_i32 : i32, i32
  }
}

</mosaic_0001>

<llo_original>
// kernel: tpu_custom_call.1
$region0: #{tpu_custom_call.1}
  #allocation0 [shape = 'u32[]', space=smem, size = 0x4, offset = 0x4, fixed_abs, tag = 'smem constant byte address 0x4 - core index']
  #allocation1 [shape = 'u32[72,128]{1,0:T(1,128)}', space=vmem, size = 0x9000, scoped, tag = 'internal scratch']
  %s0 = inlined_call_operand.vmem [shape: f32[32,32], index: 0, kind: input, shape index: {}]
  %s1 = inlined_call_operand.vmem [shape: f32[32,384], index: 1, kind: input, shape index: {}]
  %s2 = inlined_call_operand.vmem [shape: f32[128,32], index: 2, kind: input, shape index: {}]
  %s3 = inlined_call_operand.vmem [shape: f32[1,32], index: 3, kind: input, shape index: {}]
  %s4 = inlined_call_operand.hbm [shape: f32[32,32], index: 4, kind: output, shape index: {}]
  %s5 = sld [smem:[#allocation0]]
  $region26: #{tpu_custom_call.1} parent=0
    _
  %s7 = ssub.s32 1, %s5
  %s8 = scalar_select 0, %s7, %s5
  $region1: #{tpu_custom_call.1} parent=0
    #allocation2 [shape = 'u8[16384]{0}', space=vmem, size = 0x4000, scoped, tag = 'output window, operand 0, single buffered']
    #allocation3 [shape = 's32[1]{0}', space=sflag, size = 0x4, scoped, tag = 'scoped memory for tpu_custom_call.1']
    %9 = vsyncpa [#allocation3], 0
    // Predicated region
    $region2: #{tpu_custom_call.1} parent=1 // pred_check
      _
    $region3: #{tpu_custom_call.1} parent=1 // pred_check_branch
      %11 = sbr.rel (0) target = $region5
    $region4: #{tpu_custom_call.1} parent=1 // pred_region
      _
    $region5: #{tpu_custom_call.1} parent=1 // pred_fallthru
      _
    // Predicated region
    $region6: #{tpu_custom_call.1} parent=1 // pred_check
      _
    $region7: #{tpu_custom_call.1} parent=1 // pred_check_branch
      %13 = sbr.rel (0) target = $region9
    $region8: #{tpu_custom_call.1} parent=1 // pred_region
      _
    $region9: #{tpu_custom_call.1} parent=1 // pred_fallthru
      _
    // Predicated region
    $region10: #{tpu_custom_call.1} parent=1 // pred_check
      _
    $region11: #{tpu_custom_call.1} parent=1 // pred_check_branch
      %15 = sbr.rel (0) target = $region13
    $region12: #{tpu_custom_call.1} parent=1 // pred_region
      _
    $region13: #{tpu_custom_call.1} parent=1 // pred_fallthru
      _
    // Predicated region
    $region14: #{tpu_custom_call.1} parent=1 // pred_check
      _
    $region15: #{tpu_custom_call.1} parent=1 // pred_check_branch
      %17 = sbr.rel (0) target = $region17
    $region16: #{tpu_custom_call.1} parent=1 // pred_region
      _
    $region17: #{tpu_custom_call.1} parent=1 // pred_fallthru
      _
    %v18 = vld [vmem:[%s0] sm:$0xff]
    %v19 = vld [vmem:[%s0 + $0x8] sm:$0xff]
    %v20 = vld [vmem:[%s0 + $0x10] sm:$0xff]
    %v21 = vld [vmem:[%s0 + $0x18] sm:$0xff]
    %v22 = vld [vmem:[%s1] sm:$0xff]
    %v23 = vld [vmem:[%s1 + $0x8] sm:$0xff]
    %v24 = vld [vmem:[%s1 + $0x10] sm:$0xff]
    %v25 = vld [vmem:[%s1 + $0x18] sm:$0xff]
    %v26 = vld [vmem:[%s1 + $0x20] sm:$0xff]
    %v27 = vld [vmem:[%s1 + $0x28] sm:$0xff]
    %v28 = vld [vmem:[%s1 + $0x30] sm:$0xff]
    %v29 = vld [vmem:[%s1 + $0x38] sm:$0xff]
    %v30 = vld [vmem:[%s1 + $0x40] sm:$0xff]
    %v31 = vld [vmem:[%s1 + $0x48] sm:$0xff]
    %v32 = vld [vmem:[%s1 + $0x50] sm:$0xff]
    %v33 = vld [vmem:[%s1 + $0x58] sm:$0xff]
    %vm34 = vcmask 261120
    %v36 = vsel %vm34, %v18, 0
    %v39 = vsel %vm34, %v19, 0
    %v42 = vsel %vm34, %v20, 0
    %v45 = vsel %vm34, %v21, 0
    %47 = vmatpush.msra.mxu0 0.0
    %48 = vmatpush.msra.mxu0 0.0
    %49 = vmatpush.msra.mxu0 0.0
    %50 = vmatpush.msra.mxu0 0.0
    %51 = vmatpush.msra.mxu0 0.0
    %52 = vmatpush.msra.mxu0 0.0
    %53 = vmatpush.msra.mxu0 0.0
    %54 = vmatpush.msra.mxu0 0.0
    %55 = vmatpush.msra.mxu0 0.0
    %56 = vmatpush.msra.mxu0 0.0
    %57 = vmatpush.msra.mxu0 0.0
    %58 = vmatpush.msra.mxu0 0.0
    %59 = vmatpush.msra.mxu0 %v31
    %60 = vmatpush.msra.mxu0 %v28
    %61 = vmatpush.msra.mxu0 %v25
    %62 = vmatpush.msra.mxu0 %v22
    %63 = vmatmul.f32.gmra.mxu0 %v36
    %v64 = vpop.f32.mrf.mxu0
    %v65 = vadd.f32 0.0, %v64
    %66 = vmatmul.f32.gmra.mxu0 %v39
    %v67 = vpop.f32.mrf.mxu0
    %v68 = vadd.f32 0.0, %v67
    %69 = vmatmul.f32.gmra.mxu0 %v42
    %v70 = vpop.f32.mrf.mxu0
    %v71 = vadd.f32 0.0, %v70
    %72 = vmatmul.f32.gmra.mxu0 %v45
    %v73 = vpop.f32.mrf.mxu0
    %v74 = vadd.f32 0.0, %v73
    %75 = vdwg.mxu0
    %76 = vmatpush.msra.mxu0 0.0
    %77 = vmatpush.msra.mxu0 0.0
    %78 = vmatpush.msra.mxu0 0.0
    %79 = vmatpush.msra.mxu0 0.0
    %80 = vmatpush.msra.mxu0 0.0
    %81 = vmatpush.msra.mxu0 0.0
    %82 = vmatpush.msra.mxu0 0.0
    %83 = vmatpush.msra.mxu0 0.0
    %84 = vmatpush.msra.mxu0 0.0
    %85 = vmatpush.msra.mxu0 0.0
    %86 = vmatpush.msra.mxu0 0.0
    %87 = vmatpush.msra.mxu0 0.0
    %88 = vmatpush.msra.mxu0 %v32
    %89 = vmatpush.msra.mxu0 %v29
    %90 = vmatpush.msra.mxu0 %v26
    %91 = vmatpush.msra.mxu0 %v23
    %92 = vmatmul.f32.gmra.mxu0 %v36
    %v93 = vpop.f32.mrf.mxu0
    %v94 = vadd.f32 0.0, %v93
    %95 = vmatmul.f32.gmra.mxu0 %v39
    %v96 = vpop.f32.mrf.mxu0
    %v97 = vadd.f32 0.0, %v96
    %98 = vmatmul.f32.gmra.mxu0 %v42
    %v99 = vpop.f32.mrf.mxu0
    %v100 = vadd.f32 0.0, %v99
    %101 = vmatmul.f32.gmra.mxu0 %v45
    %v102 = vpop.f32.mrf.mxu0
    %v103 = vadd.f32 0.0, %v102
    %104 = vdwg.mxu0
    %105 = vmatpush.msra.mxu0 0.0
    %106 = vmatpush.msra.mxu0 0.0
    %107 = vmatpush.msra.mxu0 0.0
    %108 = vmatpush.msra.mxu0 0.0
    %109 = vmatpush.msra.mxu0 0.0
    %110 = vmatpush.msra.mxu0 0.0
    %111 = vmatpush.msra.mxu0 0.0
    %112 = vmatpush.msra.mxu0 0.0
    %113 = vmatpush.msra.mxu0 0.0
    %114 = vmatpush.msra.mxu0 0.0
    %115 = vmatpush.msra.mxu0 0.0
    %116 = vmatpush.msra.mxu0 0.0
    %117 = vmatpush.msra.mxu0 %v33
    %118 = vmatpush.msra.mxu0 %v30
    %119 = vmatpush.msra.mxu0 %v27
    %120 = vmatpush.msra.mxu0 %v24
    %121 = vmatmul.f32.gmra.mxu0 %v36
    %v122 = vpop.f32.mrf.mxu0
    %v123 = vadd.f32 0.0, %v122
    %124 = vmatmul.f32.gmra.mxu0 %v39
    %v125 = vpop.f32.mrf.mxu0
    %v126 = vadd.f32 0.0, %v125
    %127 = vmatmul.f32.gmra.mxu0 %v42
    %v128 = vpop.f32.mrf.mxu0
    %v129 = vadd.f32 0.0, %v128
    %130 = vmatmul.f32.gmra.mxu0 %v45
    %v131 = vpop.f32.mrf.mxu0
    %v132 = vadd.f32 0.0, %v131
    %133 = vdwg.mxu0
    %134 = vmatpush.xpose.msra.mxu0 0.0
    %135 = vmatpush.xpose.msra.mxu0 0.0
    %136 = vmatpush.xpose.msra.mxu0 0.0
    %137 = vmatpush.xpose.msra.mxu0 0.0
    %138 = vmatpush.xpose.msra.mxu0 0.0
    %139 = vmatpush.xpose.msra.mxu0 0.0
    %140 = vmatpush.xpose.msra.mxu0 0.0
    %141 = vmatpush.xpose.msra.mxu0 0.0
    %142 = vmatpush.xpose.msra.mxu0 0.0
    %143 = vmatpush.xpose.msra.mxu0 0.0
    %144 = vmatpush.xpose.msra.mxu0 0.0
    %145 = vmatpush.xpose.msra.mxu0 0.0
    %146 = vmatpush.xpose.msra.mxu0 0.0
    %147 = vmatpush.xpose.msra.mxu0 0.0
    %148 = vmatpush.xpose.msra.mxu0 %v97
    %149 = vmatpush.xpose.msra.mxu0 %v94
    %150 = vmatmul.f32.gmra.mxu0 %v65
    %v151 = vpop.f32.mrf.mxu0
    %v152 = vadd.f32 0.0, %v151
    %153 = vmatmul.f32.gmra.mxu0 %v68
    %v154 = vpop.f32.mrf.mxu0
    %v155 = vadd.f32 0.0, %v154
    %156 = vdwg.mxu0
    %157 = vmatpush.xpose.msra.mxu0 0.0
    %158 = vmatpush.xpose.msra.mxu0 0.0
    %159 = vmatpush.xpose.msra.mxu0 0.0
    %160 = vmatpush.xpose.msra.mxu0 0.0
    %161 = vmatpush.xpose.msra.mxu0 0.0
    %162 = vmatpush.xpose.msra.mxu0 0.0
    %163 = vmatpush.xpose.msra.mxu0 0.0
    %164 = vmatpush.xpose.msra.mxu0 0.0
    %165 = vmatpush.xpose.msra.mxu0 0.0
    %166 = vmatpush.xpose.msra.mxu0 0.0
    %167 = vmatpush.xpose.msra.mxu0 0.0
    %168 = vmatpush.xpose.msra.mxu0 0.0
    %169 = vmatpush.xpose.msra.mxu0 0.0
    %170 = vmatpush.xpose.msra.mxu0 0.0
    %171 = vmatpush.xpose.msra.mxu0 %v103
    %172 = vmatpush.xpose.msra.mxu0 %v100
    %173 = vmatmul.f32.gmra.mxu0 %v71
    %v174 = vpop.f32.mrf.mxu0
    %v175 = vadd.f32 0.0, %v174
    %176 = vmatmul.f32.gmra.mxu0 %v74
    %v177 = vpop.f32.mrf.mxu0
    %v178 = vadd.f32 0.0, %v177
    %179 = vdwg.mxu0
    %v180 = vmul.f32 %v152, 0.25
    %v181 = vmul.f32 %v155, 0.25
    %v182 = vmul.f32 %v175, 0.25
    %v183 = vmul.f32 %v178, 0.25
    %vm184 = vcmask 130048
    %v185 = vsel %vm184, %v180, -inf
    %186 = vmax.xlane.f32.xlu0 %v185
    %v187 = vpop.xlane.xlu0 %186
    %v188 = vsel %vm184, %v181, -inf
    %189 = vmax.xlane.f32.xlu0 %v188
    %v190 = vpop.xlane.xlu0 %189
    %v191 = vsel %vm184, %v182, -inf
    %192 = vmax.xlane.f32.xlu0 %v191
    %v193 = vpop.xlane.xlu0 %192
    %v194 = vsel %vm184, %v183, -inf
    %195 = vmax.xlane.f32.xlu0 %v194
    %v196 = vpop.xlane.xlu0 %195
    %v197 = vsub.f32 %v180, %v187
    %v198 = vsub.f32 %v181, %v190
    %v199 = vsub.f32 %v182, %v193
    %v200 = vsub.f32 %v183, %v196
    %v201 = vmul.f32 %v197, 1.442695
    %v202 = vpow.pop %v201
    %v203 = vmul.f32 %v198, 1.442695
    %v204 = vpow.pop %v203
    %v205 = vmul.f32 %v199, 1.442695
    %v206 = vpow.pop %v205
    %v207 = vmul.f32 %v200, 1.442695
    %v208 = vpow.pop %v207
    %v209 = vsel %vm184, %v202, 0.0
    %210 = vadd.xlane.f32.xlu0 %v209
    %v211 = vpop.xlane.xlu0 %210
    %v212 = vsel %vm184, %v204, 0.0
    %213 = vadd.xlane.f32.xlu0 %v212
    %v214 = vpop.xlane.xlu0 %213
    %v215 = vsel %vm184, %v206, 0.0
    %216 = vadd.xlane.f32.xlu0 %v215
    %v217 = vpop.xlane.xlu0 %216
    %v218 = vsel %vm184, %v208, 0.0
    %219 = vadd.xlane.f32.xlu0 %v218
    %v220 = vpop.xlane.xlu0 %219
    %v221 = vrcp.pop %v211
    %v222 = vmul.f32 %v211, %v221
    %v223 = vsub.f32 1.0, %v222
    %v224 = vmul.f32 %v221, %v223
    %v225 = vadd.f32 %v221, %v224
    %vm226 = vweird.f32 %v211
    %vm227 = vweird.f32 %v221
    %vm228 = vmor %vm226, %vm227
    %v229 = vsel %vm228, %v221, %v225
    %v230 = vand.u32 2147483647, %v211
    %vm231 = vcmp.eq.f32.partialorder %v230, 8.507059e+37
    %v232 = vand.u32 %v211, 2147483648
    %v233 = vor.u32 1.1754944e-38, %v232
    %v234 = vsel %vm231, %v233, %v229
    %v235 = vmul.f32 %v202, %v234
    %v236 = vrcp.pop %v214
    %v237 = vmul.f32 %v214, %v236
    %v238 = vsub.f32 1.0, %v237
    %v239 = vmul.f32 %v236, %v238
    %v240 = vadd.f32 %v236, %v239
    %vm241 = vweird.f32 %v214
    %vm242 = vweird.f32 %v236
    %vm243 = vmor %vm241, %vm242
    %v244 = vsel %vm243, %v236, %v240
    %v245 = vand.u32 2147483647, %v214
    %vm246 = vcmp.eq.f32.partialorder %v245, 8.507059e+37
    %v247 = vand.u32 %v214, 2147483648
    %v248 = vor.u32 1.1754944e-38, %v247
    %v249 = vsel %vm246, %v248, %v244
    %v250 = vmul.f32 %v204, %v249
    %v251 = vrcp.pop %v217
    %v252 = vmul.f32 %v217, %v251
    %v253 = vsub.f32 1.0, %v252
    %v254 = vmul.f32 %v251, %v253
    %v255 = vadd.f32 %v251, %v254
    %vm256 = vweird.f32 %v217
    %vm257 = vweird.f32 %v251
    %vm258 = vmor %vm256, %vm257
    %v259 = vsel %vm258, %v251, %v255
    %v260 = vand.u32 2147483647, %v217
    %vm261 = vcmp.eq.f32.partialorder %v260, 8.507059e+37
    %v262 = vand.u32 %v217, 2147483648
    %v263 = vor.u32 1.1754944e-38, %v262
    %v264 = vsel %vm261, %v263, %v259
    %v265 = vmul.f32 %v206, %v264
    %v266 = vrcp.pop %v220
    %v267 = vmul.f32 %v220, %v266
    %v268 = vsub.f32 1.0, %v267
    %v269 = vmul.f32 %v266, %v268
    %v270 = vadd.f32 %v266, %v269
    %vm271 = vweird.f32 %v220
    %vm272 = vweird.f32 %v266
    %vm273 = vmor %vm271, %vm272
    %v274 = vsel %vm273, %v266, %v270
    %v275 = vand.u32 2147483647, %v220
    %vm276 = vcmp.eq.f32.partialorder %v275, 8.507059e+37
    %v277 = vand.u32 %v220, 2147483648
    %v278 = vor.u32 1.1754944e-38, %v277
    %v279 = vsel %vm276, %v278, %v274
    %v280 = vmul.f32 %v208, %v279
    %v282 = vsel %vm184, %v235, 0
    %v285 = vsel %vm184, %v250, 0
    %287 = vmatpush.msra.mxu0 0.0
    %288 = vmatpush.msra.mxu0 0.0
    %289 = vmatpush.msra.mxu0 0.0
    %290 = vmatpush.msra.mxu0 0.0
    %291 = vmatpush.msra.mxu0 0.0
    %292 = vmatpush.msra.mxu0 0.0
    %293 = vmatpush.msra.mxu0 0.0
    %294 = vmatpush.msra.mxu0 0.0
    %295 = vmatpush.msra.mxu0 0.0
    %296 = vmatpush.msra.mxu0 0.0
    %297 = vmatpush.msra.mxu0 0.0
    %298 = vmatpush.msra.mxu0 0.0
    %299 = vmatpush.msra.mxu0 0.0
    %300 = vmatpush.msra.mxu0 0.0
    %301 = vmatpush.msra.mxu0 %v126
    %302 = vmatpush.msra.mxu0 %v123
    %303 = vmatmul.f32.gmra.mxu0 %v282
    %v304 = vpop.f32.mrf.mxu0
    %v305 = vadd.f32 0.0, %v304
    %306 = vmatmul.f32.gmra.mxu0 %v285
    %v307 = vpop.f32.mrf.mxu0
    %v308 = vadd.f32 0.0, %v307
    %309 = vdwg.mxu0
    %v311 = vsel %vm184, %v265, 0
    %v314 = vsel %vm184, %v280, 0
    %316 = vmatpush.msra.mxu0 0.0
    %317 = vmatpush.msra.mxu0 0.0
    %318 = vmatpush.msra.mxu0 0.0
    %319 = vmatpush.msra.mxu0 0.0
    %320 = vmatpush.msra.mxu0 0.0
    %321 = vmatpush.msra.mxu0 0.0
    %322 = vmatpush.msra.mxu0 0.0
    %323 = vmatpush.msra.mxu0 0.0
    %324 = vmatpush.msra.mxu0 0.0
    %325 = vmatpush.msra.mxu0 0.0
    %326 = vmatpush.msra.mxu0 0.0
    %327 = vmatpush.msra.mxu0 0.0
    %328 = vmatpush.msra.mxu0 0.0
    %329 = vmatpush.msra.mxu0 0.0
    %330 = vmatpush.msra.mxu0 %v132
    %331 = vmatpush.msra.mxu0 %v129
    %332 = vmatmul.f32.gmra.mxu0 %v311
    %v333 = vpop.f32.mrf.mxu0
    %v334 = vadd.f32 0.0, %v333
    %335 = vmatmul.f32.gmra.mxu0 %v314
    %v336 = vpop.f32.mrf.mxu0
    %v337 = vadd.f32 0.0, %v336
    %338 = vdwg.mxu0
    %v339 = vld [vmem:[%s2] sm:$0xff]
    %v340 = vld [vmem:[%s2 + $0x8] sm:$0xff]
    %v341 = vld [vmem:[%s2 + $0x10] sm:$0xff]
    %v342 = vld [vmem:[%s2 + $0x18] sm:$0xff]
    %v343 = vld [vmem:[%s2 + $0x20] sm:$0xff]
    %v344 = vld [vmem:[%s2 + $0x28] sm:$0xff]
    %v345 = vld [vmem:[%s2 + $0x30] sm:$0xff]
    %v346 = vld [vmem:[%s2 + $0x38] sm:$0xff]
    %v347 = vld [vmem:[%s2 + $0x40] sm:$0xff]
    %v348 = vld [vmem:[%s2 + $0x48] sm:$0xff]
    %v349 = vld [vmem:[%s2 + $0x50] sm:$0xff]
    %v350 = vld [vmem:[%s2 + $0x58] sm:$0xff]
    %v351 = vld [vmem:[%s2 + $0x60] sm:$0xff]
    %v352 = vld [vmem:[%s2 + $0x68] sm:$0xff]
    %v353 = vld [vmem:[%s2 + $0x70] sm:$0xff]
    %v354 = vld [vmem:[%s2 + $0x78] sm:$0xff]
    %v355 = vld [vmem:[%s3] sm:$0x1]
    %v357 = vperm.slane %v355, 0
    %359 = vmatpush.msra.mxu0 %v354
    %360 = vmatpush.msra.mxu0 %v353
    %361 = vmatpush.msra.mxu0 %v352
    %362 = vmatpush.msra.mxu0 %v351
    %363 = vmatpush.msra.mxu0 %v350
    %364 = vmatpush.msra.mxu0 %v349
    %365 = vmatpush.msra.mxu0 %v348
    %366 = vmatpush.msra.mxu0 %v347
    %367 = vmatpush.msra.mxu0 %v346
    %368 = vmatpush.msra.mxu0 %v345
    %369 = vmatpush.msra.mxu0 %v344
    %370 = vmatpush.msra.mxu0 %v343
    %371 = vmatpush.msra.mxu0 %v342
    %372 = vmatpush.msra.mxu0 %v341
    %373 = vmatpush.msra.mxu0 %v340
    %374 = vmatpush.msra.mxu0 %v339
    %375 = vmatmul.f32.gmra.mxu0 %v305
    %v376 = vpop.f32.mrf.mxu0
    %v377 = vadd.f32 %v357, %v376
    %378 = vmatmul.f32.gmra.mxu0 %v308
    %v379 = vpop.f32.mrf.mxu0
    %v380 = vadd.f32 %v357, %v379
    %381 = vmatmul.f32.gmra.mxu0 %v334
    %v382 = vpop.f32.mrf.mxu0
    %v383 = vadd.f32 %v357, %v382
    %384 = vmatmul.f32.gmra.mxu0 %v337
    %v385 = vpop.f32.mrf.mxu0
    %v386 = vadd.f32 %v357, %v385
    %387 = vdwg.mxu0
    %388 = vst.msk [vmem:[#allocation2] sm:$0xff] %vm34, %v377
    %389 = vst.msk [vmem:[#allocation2 + $0x8] sm:$0xff] %vm34, %v380
    %390 = vst.msk [vmem:[#allocation2 + $0x10] sm:$0xff] %vm34, %v383
    %391 = vst.msk [vmem:[#allocation2 + $0x18] sm:$0xff] %vm34, %v386
    // Predicated region
    $region18: #{tpu_custom_call.1} parent=1 // pred_check
      _
    $region19: #{tpu_custom_call.1} parent=1 // pred_check_branch
      %393 = sbr.rel (0) target = $region21
    $region20: #{tpu_custom_call.1} parent=1 // pred_region
      %395 = vsyncadd [#allocation3], 0
      %s396 = sshll.u32 [#allocation2], 4
      %s397 = int_to_ptr.vmem [resolvable:$true] %s396
      %s398 = sshll.u32 %s4, 4
      %s399 = int_to_ptr.hbm [resolvable:$true] %s398
      %404 = dma.vmem_to_hbm [thread:$0]  %s397, 512, %s399, [#allocation3], 128, 128, 8
    $region21: #{tpu_custom_call.1} parent=1 // pred_fallthru
      _
    // Predicated region
    $region22: #{tpu_custom_call.1} parent=1 // pred_check
      _
    $region23: #{tpu_custom_call.1} parent=1 // pred_check_branch
      %406 = sbr.rel (0) target = $region25
    $region24: #{tpu_custom_call.1} parent=1 // pred_region
      %408 = dma.done [#allocation3], 512
    $region25: #{tpu_custom_call.1} parent=1 // pred_fallthru
      _
    %409 = vsyncpa [#allocation3], 1

// kernel: tpu_custom_call.1
$region0: #{tpu_custom_call.1}
  #allocation0 [shape = 'u32[]', space=smem, size = 0x4, offset = 0x4, fixed_abs, tag = 'smem constant byte address 0x4 - core index']
  #allocation1 [shape = 'u32[72,128]{1,0:T(1,128)}', space=vmem, size = 0x9000, scoped, tag = 'internal scratch']
  %s0 = inlined_call_operand.vmem [shape: f32[32,32], index: 0, kind: input, shape index: {}]
  %s1 = inlined_call_operand.vmem [shape: f32[32,384], index: 1, kind: input, shape index: {}]
  %s2 = inlined_call_operand.vmem [shape: f32[128,32], index: 2, kind: input, shape index: {}]
  %s3 = inlined_call_operand.vmem [shape: f32[1,32], index: 3, kind: input, shape index: {}]
  %s4 = inlined_call_operand.hbm [shape: f32[32,32], index: 4, kind: output, shape index: {}]
  %s5 = sld [smem:[#allocation0]]
  $region26: #{tpu_custom_call.1} parent=0
    _
  %s7 = ssub.s32 1, %s5
  %s8 = scalar_select 0, %s7, %s5
  $region1: #{tpu_custom_call.1} parent=0
    #allocation2 [shape = 'u8[16384]{0}', space=vmem, size = 0x4000, scoped, tag = 'output window, operand 0, single buffered']
    #allocation3 [shape = 's32[1]{0}', space=sflag, size = 0x4, scoped, tag = 'scoped memory for tpu_custom_call.1']
    %9 = vsyncpa [#allocation3], 0
    // Predicated region
    $region2: #{tpu_custom_call.1} parent=1 // pred_check
      _
    $region3: #{tpu_custom_call.1} parent=1 // pred_check_branch
      %11 = sbr.rel (0) target = $region5
    $region4: #{tpu_custom_call.1} parent=1 // pred_region
      _
    $region5: #{tpu_custom_call.1} parent=1 // pred_fallthru
      _
    // Predicated region
    $region6: #{tpu_custom_call.1} parent=1 // pred_check
      _
    $region7: #{tpu_custom_call.1} parent=1 // pred_check_branch
      %13 = sbr.rel (0) target = $region9
    $region8: #{tpu_custom_call.1} parent=1 // pred_region
      _
    $region9: #{tpu_custom_call.1} parent=1 // pred_fallthru
      _
    // Predicated region
    $region10: #{tpu_custom_call.1} parent=1 // pred_check
      _
    $region11: #{tpu_custom_call.1} parent=1 // pred_check_branch
      %15 = sbr.rel (0) target = $region13
    $region12: #{tpu_custom_call.1} parent=1 // pred_region
      _
    $region13: #{tpu_custom_call.1} parent=1 // pred_fallthru
      _
    // Predicated region
    $region14: #{tpu_custom_call.1} parent=1 // pred_check
      _
    $region15: #{tpu_custom_call.1} parent=1 // pred_check_branch
      %17 = sbr.rel (0) target = $region17
    $region16: #{tpu_custom_call.1} parent=1 // pred_region
      _
    $region17: #{tpu_custom_call.1} parent=1 // pred_fallthru
      _
    %v18 = vld [vmem:[%s0] sm:$0xff]
    %v19 = vld [vmem:[%s0 + $0x8] sm:$0xff]
    %v20 = vld [vmem:[%s0 + $0x10] sm:$0xff]
    %v21 = vld [vmem:[%s0 + $0x18] sm:$0xff]
    %v22 = vld [vmem:[%s1] sm:$0xff]
    %v23 = vld [vmem:[%s1 + $0x8] sm:$0xff]
    %v24 = vld [vmem:[%s1 + $0x10] sm:$0xff]
    %v25 = vld [vmem:[%s1 + $0x18] sm:$0xff]
    %v26 = vld [vmem:[%s1 + $0x20] sm:$0xff]
    %v27 = vld [vmem:[%s1 + $0x28] sm:$0xff]
    %v28 = vld [vmem:[%s1 + $0x30] sm:$0xff]
    %v29 = vld [vmem:[%s1 + $0x38] sm:$0xff]
    %v30 = vld [vmem:[%s1 + $0x40] sm:$0xff]
    %v31 = vld [vmem:[%s1 + $0x48] sm:$0xff]
    %v32 = vld [vmem:[%s1 + $0x50] sm:$0xff]
    %v33 = vld [vmem:[%s1 + $0x58] sm:$0xff]
    %vm34 = vcmask 261120
    %v36 = vsel %vm34, %v18, 0
    %v39 = vsel %vm34, %v19, 0
    %v42 = vsel %vm34, %v20, 0
    %v45 = vsel %vm34, %v21, 0
    %47 = vmatpush.msra.mxu0 0.0
    %48 = vmatpush.msra.mxu0 0.0
    %49 = vmatpush.msra.mxu0 0.0
    %50 = vmatpush.msra.mxu0 0.0
    %51 = vmatpush.msra.mxu0 0.0
    %52 = vmatpush.msra.mxu0 0.0
    %53 = vmatpush.msra.mxu0 0.0
    %54 = vmatpush.msra.mxu0 0.0
    %55 = vmatpush.msra.mxu0 0.0
    %56 = vmatpush.msra.mxu0 0.0
    %57 = vmatpush.msra.mxu0 0.0
    %58 = vmatpush.msra.mxu0 0.0
    %59 = vmatpush.msra.mxu0 %v31
    %60 = vmatpush.msra.mxu0 %v28
    %61 = vmatpush.msra.mxu0 %v25
    %62 = vmatpush.msra.mxu0 %v22
    %63 = vmatmul.f32.gmra.mxu0 %v36
    %v64 = vpop.f32.mrf.mxu0
    %v65 = vadd.f32 0.0, %v64
    %66 = vmatmul.f32.gmra.mxu0 %v39
    %v67 = vpop.f32.mrf.mxu0
    %v68 = vadd.f32 0.0, %v67
    %69 = vmatmul.f32.gmra.mxu0 %v42
    %v70 = vpop.f32.mrf.mxu0
    %v71 = vadd.f32 0.0, %v70
    %72 = vmatmul.f32.gmra.mxu0 %v45
    %v73 = vpop.f32.mrf.mxu0
    %v74 = vadd.f32 0.0, %v73
    %75 = vdwg.mxu0
    %76 = vmatpush.msra.mxu0 0.0
    %77 = vmatpush.msra.mxu0 0.0
    %78 = vmatpush.msra.mxu0 0.0
    %79 = vmatpush.msra.mxu0 0.0
    %80 = vmatpush.msra.mxu0 0.0
    %81 = vmatpush.msra.mxu0 0.0
    %82 = vmatpush.msra.mxu0 0.0
    %83 = vmatpush.msra.mxu0 0.0
    %84 = vmatpush.msra.mxu0 0.0
    %85 = vmatpush.msra.mxu0 0.0
    %86 = vmatpush.msra.mxu0 0.0
    %87 = vmatpush.msra.mxu0 0.0
    %88 = vmatpush.msra.mxu0 %v32
    %89 = vmatpush.msra.mxu0 %v29
    %90 = vmatpush.msra.mxu0 %v26
    %91 = vmatpush.msra.mxu0 %v23
    %92 = vmatmul.f32.gmra.mxu0 %v36
    %v93 = vpop.f32.mrf.mxu0
    %v94 = vadd.f32 0.0, %v93
    %95 = vmatmul.f32.gmra.mxu0 %v39
    %v96 = vpop.f32.mrf.mxu0
    %v97 = vadd.f32 0.0, %v96
    %98 = vmatmul.f32.gmra.mxu0 %v42
    %v99 = vpop.f32.mrf.mxu0
    %v100 = vadd.f32 0.0, %v99
    %101 = vmatmul.f32.gmra.mxu0 %v45
    %v102 = vpop.f32.mrf.mxu0
    %v103 = vadd.f32 0.0, %v102
    %104 = vdwg.mxu0
    %105 = vmatpush.msra.mxu0 0.0
    %106 = vmatpush.msra.mxu0 0.0
    %107 = vmatpush.msra.mxu0 0.0
    %108 = vmatpush.msra.mxu0 0.0
    %109 = vmatpush.msra.mxu0 0.0
    %110 = vmatpush.msra.mxu0 0.0
    %111 = vmatpush.msra.mxu0 0.0
    %112 = vmatpush.msra.mxu0 0.0
    %113 = vmatpush.msra.mxu0 0.0
    %114 = vmatpush.msra.mxu0 0.0
    %115 = vmatpush.msra.mxu0 0.0
    %116 = vmatpush.msra.mxu0 0.0
    %117 = vmatpush.msra.mxu0 %v33
    %118 = vmatpush.msra.mxu0 %v30
    %119 = vmatpush.msra.mxu0 %v27
    %120 = vmatpush.msra.mxu0 %v24
    %121 = vmatmul.f32.gmra.mxu0 %v36
    %v122 = vpop.f32.mrf.mxu0
    %v123 = vadd.f32 0.0, %v122
    %124 = vmatmul.f32.gmra.mxu0 %v39
    %v125 = vpop.f32.mrf.mxu0
    %v126 = vadd.f32 0.0, %v125
    %127 = vmatmul.f32.gmra.mxu0 %v42
    %v128 = vpop.f32.mrf.mxu0
    %v129 = vadd.f32 0.0, %v128
    %130 = vmatmul.f32.gmra.mxu0 %v45
    %v131 = vpop.f32.mrf.mxu0
    %v132 = vadd.f32 0.0, %v131
    %133 = vdwg.mxu0
    %134 = vmatpush.xpose.msra.mxu0 0.0
    %135 = vmatpush.xpose.msra.mxu0 0.0
    %136 = vmatpush.xpose.msra.mxu0 0.0
    %137 = vmatpush.xpose.msra.mxu0 0.0
    %138 = vmatpush.xpose.msra.mxu0 0.0
    %139 = vmatpush.xpose.msra.mxu0 0.0
    %140 = vmatpush.xpose.msra.mxu0 0.0
    %141 = vmatpush.xpose.msra.mxu0 0.0
    %142 = vmatpush.xpose.msra.mxu0 0.0
    %143 = vmatpush.xpose.msra.mxu0 0.0
    %144 = vmatpush.xpose.msra.mxu0 0.0
    %145 = vmatpush.xpose.msra.mxu0 0.0
    %146 = vmatpush.xpose.msra.mxu0 0.0
    %147 = vmatpush.xpose.msra.mxu0 0.0
    %148 = vmatpush.xpose.msra.mxu0 %v97
    %149 = vmatpush.xpose.msra.mxu0 %v94
    %150 = vmatmul.f32.gmra.mxu0 %v65
    %v151 = vpop.f32.mrf.mxu0
    %v152 = vadd.f32 0.0, %v151
    %153 = vmatmul.f32.gmra.mxu0 %v68
    %v154 = vpop.f32.mrf.mxu0
    %v155 = vadd.f32 0.0, %v154
    %156 = vdwg.mxu0
    %157 = vmatpush.xpose.msra.mxu0 0.0
    %158 = vmatpush.xpose.msra.mxu0 0.0
    %159 = vmatpush.xpose.msra.mxu0 0.0
    %160 = vmatpush.xpose.msra.mxu0 0.0
    %161 = vmatpush.xpose.msra.mxu0 0.0
    %162 = vmatpush.xpose.msra.mxu0 0.0
    %163 = vmatpush.xpose.msra.mxu0 0.0
    %164 = vmatpush.xpose.msra.mxu0 0.0
    %165 = vmatpush.xpose.msra.mxu0 0.0
    %166 = vmatpush.xpose.msra.mxu0 0.0
    %167 = vmatpush.xpose.msra.mxu0 0.0
    %168 = vmatpush.xpose.msra.mxu0 0.0
    %169 = vmatpush.xpose.msra.mxu0 0.0
    %170 = vmatpush.xpose.msra.mxu0 0.0
    %171 = vmatpush.xpose.msra.mxu0 %v103
    %172 = vmatpush.xpose.msra.mxu0 %v100
    %173 = vmatmul.f32.gmra.mxu0 %v71
    %v174 = vpop.f32.mrf.mxu0
    %v175 = vadd.f32 0.0, %v174
    %176 = vmatmul.f32.gmra.mxu0 %v74
    %v177 = vpop.f32.mrf.mxu0
    %v178 = vadd.f32 0.0, %v177
    %179 = vdwg.mxu0
    %v180 = vmul.f32 %v152, 0.25
    %v181 = vmul.f32 %v155, 0.25
    %v182 = vmul.f32 %v175, 0.25
    %v183 = vmul.f32 %v178, 0.25
    %vm184 = vcmask 130048
    %v185 = vsel %vm184, %v180, -inf
    %186 = vmax.xlane.f32.xlu0 %v185
    %v187 = vpop.xlane.xlu0 %186
    %v188 = vsel %vm184, %v181, -inf
    %189 = vmax.xlane.f32.xlu0 %v188
    %v190 = vpop.xlane.xlu0 %189
    %v191 = vsel %vm184, %v182, -inf
    %192 = vmax.xlane.f32.xlu0 %v191
    %v193 = vpop.xlane.xlu0 %192
    %v194 = vsel %vm184, %v183, -inf
    %195 = vmax.xlane.f32.xlu0 %v194
    %v196 = vpop.xlane.xlu0 %195
    %v197 = vsub.f32 %v180, %v187
    %v198 = vsub.f32 %v181, %v190
    %v199 = vsub.f32 %v182, %v193
    %v200 = vsub.f32 %v183, %v196
    %v201 = vmul.f32 %v197, 1.442695
    %v202 = vpow.pop %v201
    %v203 = vmul.f32 %v198, 1.442695
    %v204 = vpow.pop %v203
    %v205 = vmul.f32 %v199, 1.442695
    %v206 = vpow.pop %v205
    %v207 = vmul.f32 %v200, 1.442695
    %v208 = vpow.pop %v207
    %v209 = vsel %vm184, %v202, 0.0
    %210 = vadd.xlane.f32.xlu0 %v209
    %v211 = vpop.xlane.xlu0 %210
    %v212 = vsel %vm184, %v204, 0.0
    %213 = vadd.xlane.f32.xlu0 %v212
    %v214 = vpop.xlane.xlu0 %213
    %v215 = vsel %vm184, %v206, 0.0
    %216 = vadd.xlane.f32.xlu0 %v215
    %v217 = vpop.xlane.xlu0 %216
    %v218 = vsel %vm184, %v208, 0.0
    %219 = vadd.xlane.f32.xlu0 %v218
    %v220 = vpop.xlane.xlu0 %219
    %v221 = vrcp.pop %v211
    %v222 = vmul.f32 %v211, %v221
    %v223 = vsub.f32 1.0, %v222
    %v224 = vmul.f32 %v221, %v223
    %v225 = vadd.f32 %v221, %v224
    %vm226 = vweird.f32 %v211
    %vm227 = vweird.f32 %v221
    %vm228 = vmor %vm226, %vm227
    %v229 = vsel %vm228, %v221, %v225
    %v230 = vand.u32 2147483647, %v211
    %vm231 = vcmp.eq.f32.partialorder %v230, 8.507059e+37
    %v232 = vand.u32 %v211, 2147483648
    %v233 = vor.u32 1.1754944e-38, %v232
    %v234 = vsel %vm231, %v233, %v229
    %v235 = vmul.f32 %v202, %v234
    %v236 = vrcp.pop %v214
    %v237 = vmul.f32 %v214, %v236
    %v238 = vsub.f32 1.0, %v237
    %v239 = vmul.f32 %v236, %v238
    %v240 = vadd.f32 %v236, %v239
    %vm241 = vweird.f32 %v214
    %vm242 = vweird.f32 %v236
    %vm243 = vmor %vm241, %vm242
    %v244 = vsel %vm243, %v236, %v240
    %v245 = vand.u32 2147483647, %v214
    %vm246 = vcmp.eq.f32.partialorder %v245, 8.507059e+37
    %v247 = vand.u32 %v214, 2147483648
    %v248 = vor.u32 1.1754944e-38, %v247
    %v249 = vsel %vm246, %v248, %v244
    %v250 = vmul.f32 %v204, %v249
    %v251 = vrcp.pop %v217
    %v252 = vmul.f32 %v217, %v251
    %v253 = vsub.f32 1.0, %v252
    %v254 = vmul.f32 %v251, %v253
    %v255 = vadd.f32 %v251, %v254
    %vm256 = vweird.f32 %v217
    %vm257 = vweird.f32 %v251
    %vm258 = vmor %vm256, %vm257
    %v259 = vsel %vm258, %v251, %v255
    %v260 = vand.u32 2147483647, %v217
    %vm261 = vcmp.eq.f32.partialorder %v260, 8.507059e+37
    %v262 = vand.u32 %v217, 2147483648
    %v263 = vor.u32 1.1754944e-38, %v262
    %v264 = vsel %vm261, %v263, %v259
    %v265 = vmul.f32 %v206, %v264
    %v266 = vrcp.pop %v220
    %v267 = vmul.f32 %v220, %v266
    %v268 = vsub.f32 1.0, %v267
    %v269 = vmul.f32 %v266, %v268
    %v270 = vadd.f32 %v266, %v269
    %vm271 = vweird.f32 %v220
    %vm272 = vweird.f32 %v266
    %vm273 = vmor %vm271, %vm272
    %v274 = vsel %vm273, %v266, %v270
    %v275 = vand.u32 2147483647, %v220
    %vm276 = vcmp.eq.f32.partialorder %v275, 8.507059e+37
    %v277 = vand.u32 %v220, 2147483648
    %v278 = vor.u32 1.1754944e-38, %v277
    %v279 = vsel %vm276, %v278, %v274
    %v280 = vmul.f32 %v208, %v279
    %v282 = vsel %vm184, %v235, 0
    %v285 = vsel %vm184, %v250, 0
    %287 = vmatpush.msra.mxu0 0.0
    %288 = vmatpush.msra.mxu0 0.0
    %289 = vmatpush.msra.mxu0 0.0
    %290 = vmatpush.msra.mxu0 0.0
    %291 = vmatpush.msra.mxu0 0.0
    %292 = vmatpush.msra.mxu0 0.0
    %293 = vmatpush.msra.mxu0 0.0
    %294 = vmatpush.msra.mxu0 0.0
    %295 = vmatpush.msra.mxu0 0.0
    %296 = vmatpush.msra.mxu0 0.0
    %297 = vmatpush.msra.mxu0 0.0
    %298 = vmatpush.msra.mxu0 0.0
    %299 = vmatpush.msra.mxu0 0.0
    %300 = vmatpush.msra.mxu0 0.0
    %301 = vmatpush.msra.mxu0 %v126
    %302 = vmatpush.msra.mxu0 %v123
    %303 = vmatmul.f32.gmra.mxu0 %v282
    %v304 = vpop.f32.mrf.mxu0
    %v305 = vadd.f32 0.0, %v304
    %306 = vmatmul.f32.gmra.mxu0 %v285
    %v307 = vpop.f32.mrf.mxu0
    %v308 = vadd.f32 0.0, %v307
    %309 = vdwg.mxu0
    %v311 = vsel %vm184, %v265, 0
    %v314 = vsel %vm184, %v280, 0
    %316 = vmatpush.msra.mxu0 0.0
    %317 = vmatpush.msra.mxu0 0.0
    %318 = vmatpush.msra.mxu0 0.0
    %319 = vmatpush.msra.mxu0 0.0
    %320 = vmatpush.msra.mxu0 0.0
    %321 = vmatpush.msra.mxu0 0.0
    %322 = vmatpush.msra.mxu0 0.0
    %323 = vmatpush.msra.mxu0 0.0
    %324 = vmatpush.msra.mxu0 0.0
    %325 = vmatpush.msra.mxu0 0.0
    %326 = vmatpush.msra.mxu0 0.0
    %327 = vmatpush.msra.mxu0 0.0
    %328 = vmatpush.msra.mxu0 0.0
    %329 = vmatpush.msra.mxu0 0.0
    %330 = vmatpush.msra.mxu0 %v132
    %331 = vmatpush.msra.mxu0 %v129
    %332 = vmatmul.f32.gmra.mxu0 %v311
    %v333 = vpop.f32.mrf.mxu0
    %v334 = vadd.f32 0.0, %v333
    %335 = vmatmul.f32.gmra.mxu0 %v314
    %v336 = vpop.f32.mrf.mxu0
    %v337 = vadd.f32 0.0, %v336
    %338 = vdwg.mxu0
    %v339 = vld [vmem:[%s2] sm:$0xff]
    %v340 = vld [vmem:[%s2 + $0x8] sm:$0xff]
    %v341 = vld [vmem:[%s2 + $0x10] sm:$0xff]
    %v342 = vld [vmem:[%s2 + $0x18] sm:$0xff]
    %v343 = vld [vmem:[%s2 + $0x20] sm:$0xff]
    %v344 = vld [vmem:[%s2 + $0x28] sm:$0xff]
    %v345 = vld [vmem:[%s2 + $0x30] sm:$0xff]
    %v346 = vld [vmem:[%s2 + $0x38] sm:$0xff]
    %v347 = vld [vmem:[%s2 + $0x40] sm:$0xff]
    %v348 = vld [vmem:[%s2 + $0x48] sm:$0xff]
    %v349 = vld [vmem:[%s2 + $0x50] sm:$0xff]
    %v350 = vld [vmem:[%s2 + $0x58] sm:$0xff]
    %v351 = vld [vmem:[%s2 + $0x60] sm:$0xff]
    %v352 = vld [vmem:[%s2 + $0x68] sm:$0xff]
    %v353 = vld [vmem:[%s2 + $0x70] sm:$0xff]
    %v354 = vld [vmem:[%s2 + $0x78] sm:$0xff]
    %v355 = vld [vmem:[%s3] sm:$0x1]
    %v357 = vperm.slane %v355, 0
    %359 = vmatpush.msra.mxu0 %v354
    %360 = vmatpush.msra.mxu0 %v353
    %361 = vmatpush.msra.mxu0 %v352
    %362 = vmatpush.msra.mxu0 %v351
    %363 = vmatpush.msra.mxu0 %v350
    %364 = vmatpush.msra.mxu0 %v349
    %365 = vmatpush.msra.mxu0 %v348
    %366 = vmatpush.msra.mxu0 %v347
    %367 = vmatpush.msra.mxu0 %v346
    %368 = vmatpush.msra.mxu0 %v345
    %369 = vmatpush.msra.mxu0 %v344
    %370 = vmatpush.msra.mxu0 %v343
    %371 = vmatpush.msra.mxu0 %v342
    %372 = vmatpush.msra.mxu0 %v341
    %373 = vmatpush.msra.mxu0 %v340
    %374 = vmatpush.msra.mxu0 %v339
    %375 = vmatmul.f32.gmra.mxu0 %v305
    %v376 = vpop.f32.mrf.mxu0
    %v377 = vadd.f32 %v357, %v376
    %378 = vmatmul.f32.gmra.mxu0 %v308
    %v379 = vpop.f32.mrf.mxu0
    %v380 = vadd.f32 %v357, %v379
    %381 = vmatmul.f32.gmra.mxu0 %v334
    %v382 = vpop.f32.mrf.mxu0
    %v383 = vadd.f32 %v357, %v382
    %384 = vmatmul.f32.gmra.mxu0 %v337
    %v385 = vpop.f32.mrf.mxu0
    %v386 = vadd.f32 %v357, %v385
    %387 = vdwg.mxu0
    %388 = vst.msk [vmem:[#allocation2] sm:$0xff] %vm34, %v377
    %389 = vst.msk [vmem:[#allocation2 + $0x8] sm:$0xff] %vm34, %v380
    %390 = vst.msk [vmem:[#allocation2 + $0x10] sm:$0xff] %vm34, %v383
    %391 = vst.msk [vmem:[#allocation2 + $0x18] sm:$0xff] %vm34, %v386
    // Predicated region
    $region18: #{tpu_custom_call.1} parent=1 // pred_check
      _
    $region19: #{tpu_custom_call.1} parent=1 // pred_check_branch
      %393 = sbr.rel (0) target = $region21
    $region20: #{tpu_custom_call.1} parent=1 // pred_region
      %395 = vsyncadd [#allocation3], 0
      %s396 = sshll.u32 [#allocation2], 4
      %s397 = int_to_ptr.vmem [resolvable:$true] %s396
      %s398 = sshll.u32 %s4, 4
      %s399 = int_to_ptr.hbm [resolvable:$true] %s398
      %404 = dma.vmem_to_hbm [thread:$0]  %s397, 512, %s399, [#allocation3], 128, 128, 8
    $region21: #{tpu_custom_call.1} parent=1 // pred_fallthru
      _
    // Predicated region
    $region22: #{tpu_custom_call.1} parent=1 // pred_check
      _
    $region23: #{tpu_custom_call.1} parent=1 // pred_check_branch
      %406 = sbr.rel (0) target = $region25
    $region24: #{tpu_custom_call.1} parent=1 // pred_region
      %408 = dma.done [#allocation3], 512
    $region25: #{tpu_custom_call.1} parent=1 // pred_fallthru
      _
    %409 = vsyncpa [#allocation3], 1

</llo_original>
